<compile_context>
chip_gen: v7x
topology: tpu7x:2x2x1
jax: 0.10.0
libtpu: 0.0.40
codegen_flags: <defaults>
</compile_context>

<pallas_src>
import functools

import jax
import jax.numpy as jnp
from jax import lax
from jax.experimental import pallas as pl
from jax.experimental.pallas import tpu as pltpu


def _vmem_capacity_bytes():
    """Per-TensorCore VMEM capacity (falls back to the smallest, v7x's 64 MiB)."""
    try:
        cap = getattr(pltpu.get_tpu_info(), "vmem_capacity_bytes", None)
        if cap:
            return int(cap)
    except Exception:
        pass
    return 64 * 1024 * 1024


# --------------------------------------------------------------------------
# Pass 1: conv tile (MXU) + per-tile BN partial statistics.
# --------------------------------------------------------------------------
def _conv_stats_kernel(patches_ref, w_ref, b_ref, conv_ref, stats_ref):
    # [tm, CK] @ [CK, OC] on the MXU, f32 accumulation + bias.
    conv = jnp.dot(patches_ref[...], w_ref[...],
                   preferred_element_type=jnp.float32)
    conv = conv + b_ref[...]
    conv_ref[...] = conv.astype(conv_ref.dtype)

    # Per-tile partial sums (pad rows of the last tile contribute exactly
    # `bias` each; corrected analytically in the XLA fold).
    s = jnp.sum(conv, axis=0, keepdims=True)          # (1, OC)
    q = jnp.sum(conv * conv, axis=0, keepdims=True)   # (1, OC)
    stats_ref[0] = jnp.concatenate([s, q], axis=0)    # (2, OC)


# --------------------------------------------------------------------------
# Pass 2: y = LeakyReLU(conv * scale + shift), tiled / parallel over M.
# --------------------------------------------------------------------------
def _bn_act_kernel(neg_slope, conv_ref, ss_ref, y_ref):
    bn = conv_ref[...] * ss_ref[0:1, :] + ss_ref[1:2, :]
    y_ref[...] = jnp.where(bn > 0, bn, neg_slope * bn).astype(y_ref.dtype)


# --------------------------------------------------------------------------
# Wrapper
# --------------------------------------------------------------------------
def basic_conv2d(x_nchw, weight, bias, gamma, beta, *,
                 stride=2, padding=2, eps=1e-5, neg_slope=0.2,
                 block_m=1024, compute_dtype=jnp.bfloat16,
                 channels_last=False):
    """x_nchw: [N,C,H,W]; weight: [OC,C,K,K]; bias/gamma/beta: [OC]."""
    N, C, H, W = x_nchw.shape
    OC, _, KH, KW = weight.shape
    OH = (H + 2 * padding - KH) // stride + 1
    OW = (W + 2 * padding - KW) // stride + 1
    M = N * OH * OW
    CK = C * KH * KW
    in_bytes = jnp.dtype(compute_dtype).itemsize

    # --- per-generation VMEM budgets (headroom left for compiler scratch) ---
    vmem_cap = _vmem_capacity_bytes()                       # 64 / 128 MiB
    vmem_limit = min(vmem_cap * 3 // 4, 100 * 1024 * 1024)  # 48 / 96-100 MiB
    tile_budget = min(vmem_cap * 5 // 8, 80 * 1024 * 1024)  # 40 / 80 MiB

    # --- pass-1 M tile: multiple of 8; double-buffered working set
    #     (patch tile in + conv tile out) plus the RESIDENT weight/bias/stat
    #     blocks must fit the tile budget. ---
    resident1 = 2 * CK * OC * in_bytes + 2 * OC * 4 + 2 * 2 * OC * 4
    per_row1 = 2 * CK * in_bytes + 2 * OC * 4
    avail1 = max(tile_budget - resident1 - (2 << 20), 8 * per_row1)
    max_tm = max(8, (avail1 // per_row1) // 8 * 8)
    tm = max(8, (min(block_m, M + 7) // 8) * 8)
    tm = min(tm, max_tm)
    Mp = -(-M // tm) * tm
    g1 = Mp // tm

    # --- pass-2 M tile: largest multiple of tm that divides Mp and fits ---
    per_row2 = 2 * OC * 4 + 2 * OC * 4
    avail2 = max(tile_budget - 2 * 2 * OC * 4 - (1 << 20), 8 * per_row2)
    max_k = max(1, min(avail2 // (per_row2 * tm), max(1, 4096 // tm), g1))
    k2 = 1
    for cand in range(int(max_k), 0, -1):
        if g1 % cand == 0:
            k2 = cand
            break
    tm2 = k2 * tm

    # --- glue: im2col directly in compute_dtype (feature dim is C-major then
    #     KH,KW, i.e. the OIHW flatten order of the weights). ---
    patches = lax.conv_general_dilated_patches(
        x_nchw.astype(compute_dtype), filter_shape=(KH, KW),
        window_strides=(stride, stride),
        padding=((padding, padding), (padding, padding)))     # [N, CK, OH, OW]
    patches = jnp.transpose(patches, (0, 2, 3, 1)).reshape(M, CK)
    patches = jnp.pad(patches, ((0, Mp - M), (0, 0)))

    w2d = weight.reshape(OC, CK).T.astype(compute_dtype)      # [CK, OC]
    b2d = bias.reshape(1, OC).astype(jnp.float32)

    # ---------------- pass 1: conv + per-tile BN partials ----------------
    conv_flat, stats = pl.pallas_call(
        _conv_stats_kernel,
        out_shape=(jax.ShapeDtypeStruct((Mp, OC), jnp.float32),
                   jax.ShapeDtypeStruct((g1, 2, OC), jnp.float32)),
        grid_spec=pltpu.PrefetchScalarGridSpec(
            num_scalar_prefetch=0,
            grid=(g1,),
            in_specs=[
                pl.BlockSpec((tm, CK), lambda i: (i, 0)),      # patch tile
                pl.BlockSpec((CK, OC), lambda i: (0, 0)),      # weights (resident)
                pl.BlockSpec((1, OC), lambda i: (0, 0)),       # bias
            ],
            out_specs=(
                pl.BlockSpec((tm, OC), lambda i: (i, 0)),      # conv tiles
                pl.BlockSpec((1, 2, OC), lambda i: (i, 0, 0)), # per-tile stats
            )),
        compiler_params=pltpu.CompilerParams(
            dimension_semantics=("parallel",),                 # megacore shardable
            vmem_limit_bytes=int(vmem_limit)),
    )(patches, w2d, b2d)

    # ----- tiny XLA fold: BN batch stats -> per-channel (scale, shift) -----
    pad_rows = float(Mp - M)
    totals = jnp.sum(stats, axis=0)                            # (2, OC)
    b32 = bias.astype(jnp.float32)
    s_tot = totals[0] - pad_rows * b32
    q_tot = totals[1] - pad_rows * b32 * b32
    mean = s_tot / float(M)
    var = jnp.maximum(q_tot / float(M) - mean * mean, 0.0)
    inv_std = lax.rsqrt(var + jnp.float32(eps))
    scale = gamma.astype(jnp.float32) * inv_std
    shift = beta.astype(jnp.float32) - mean * scale
    ss = jnp.stack([scale, shift], axis=0)                     # (2, OC)

    # ---------------- pass 2: BN affine + LeakyReLU ----------------
    k2fn = functools.partial(_bn_act_kernel, float(neg_slope))
    y_flat = pl.pallas_call(
        k2fn,
        out_shape=jax.ShapeDtypeStruct((Mp, OC), jnp.float32),
        grid_spec=pltpu.PrefetchScalarGridSpec(
            num_scalar_prefetch=0,
            grid=(Mp // tm2,),
            in_specs=[
                pl.BlockSpec((tm2, OC), lambda i: (i, 0)),
                pl.BlockSpec((2, OC), lambda i: (0, 0)),
            ],
            out_specs=pl.BlockSpec((tm2, OC), lambda i: (i, 0))),
        compiler_params=pltpu.CompilerParams(
            dimension_semantics=("parallel",),
            vmem_limit_bytes=int(vmem_limit)),
    )(conv_flat, ss)

    # --- glue: drop pad rows; NHWC is free, NCHW only for PyTorch parity ---
    conv_out = conv_flat[:M].reshape(N, OH, OW, OC)
    y_out = y_flat[:M].reshape(N, OH, OW, OC)
    if not channels_last:
        # TODO(synk): skip these full-array transposes when the consumer can
        # take NHWC (TPU-friendly layout) directly.
        conv_out = jnp.transpose(conv_out, (0, 3, 1, 2))
        y_out = jnp.transpose(y_out, (0, 3, 1, 2))
    return conv_out, y_out


# --------------------------------------------------------------------------
# Pure-JAX reference
# --------------------------------------------------------------------------
def _reference(x, weight, bias, gamma, beta, *, stride=2, padding=2,
               eps=1e-5, neg_slope=0.2):
    conv = lax.conv_general_dilated(
        x, weight, window_strides=(stride, stride),
        padding=((padding, padding), (padding, padding)),
        dimension_numbers=('NCHW', 'OIHW', 'NCHW'))
    conv = conv + bias[None, :, None, None]
    mean = jnp.mean(conv, axis=(0, 2, 3), keepdims=True)
    var = jnp.mean((conv - mean) ** 2, axis=(0, 2, 3), keepdims=True)
    bn = (conv - mean) * lax.rsqrt(var + eps)
    bn = bn * gamma[None, :, None, None] + beta[None, :, None, None]
    y = jnp.where(bn > 0, bn, neg_slope * bn)
    return conv, y


if __name__ == "__main__":
    key = jax.random.PRNGKey(0)
    k_x, k_w, k_b, k_g, k_be = jax.random.split(key, 5)

    N, C, H, W = 2, 4, 16, 16
    OC, K = 8, 5

    x = jax.random.normal(k_x, (N, C, H, W), jnp.float32)
    weight = jax.random.normal(k_w, (OC, C, K, K), jnp.float32) * 0.1
    bias = jax.random.normal(k_b, (OC,), jnp.float32) * 0.1
    gamma = 1.0 + 0.1 * jax.random.normal(k_g, (OC,), jnp.float32)
    beta = 0.1 * jax.random.normal(k_be, (OC,), jnp.float32)

    conv_ref, y_ref = _reference(x, weight, bias, gamma, beta)

    # 1) f32 operands, small tile (forces a multi-step pass-1 grid with pad
    #    rows): exercises the per-tile partial-stats path, the analytical pad
    #    correction, and the decoupled pass-2 tile; tight tolerance.
    f32_fn = jax.jit(functools.partial(basic_conv2d, block_m=48,
                                       compute_dtype=jnp.float32))
    conv_out, y_out = f32_fn(x, weight, bias, gamma, beta)
    jax.block_until_ready((conv_out, y_out))
    assert conv_out.shape == (N, OC, 8, 8) and y_out.shape == (N, OC, 8, 8)
    assert jnp.allclose(conv_out, conv_ref, atol=1e-3, rtol=1e-3)
    assert jnp.allclose(y_out, y_ref, atol=1e-3, rtol=1e-3)

    # 2) bf16 MXU operands (f32 accumulation), default tiling: perf path;
    #    looser tolerance to account for bf16 operand rounding.
    bf16_fn = jax.jit(basic_conv2d)
    conv_bf, y_bf = bf16_fn(x, weight, bias, gamma, beta)
    jax.block_until_ready((conv_bf, y_bf))
    assert jnp.allclose(conv_bf, conv_ref, atol=5e-2, rtol=5e-2)
    assert jnp.allclose(y_bf, y_ref, atol=5e-2, rtol=5e-2)

    print("KERNEL_OK")
</pallas_src>

<mosaic_0001>
module attributes {stable_mosaic.version = 11 : i64} {
  func.func @_conv_stats_kernel(%arg0: i32, %arg1: memref<48x100xf32, #tpu.memory_space<vmem>>, %arg2: memref<100x8xf32, #tpu.memory_space<vmem>>, %arg3: memref<1x8xf32, #tpu.memory_space<vmem>>, %arg4: memref<48x8xf32, #tpu.memory_space<vmem>>, %arg5: memref<1x2x8xf32, #tpu.memory_space<vmem>>) attributes {dimension_semantics = [#tpu.dimension_semantics<parallel>], iteration_bounds = array<i64: 3>, scalar_prefetch = 0 : i64, scratch_operands = 0 : i64, tpu.core_type = #tpu.core_type<tc>, window_params = [{transform_indices = @transform_0, window_bounds = array<i64: 48, 100>}, {pipeline_mode = #tpu.pipeline_mode<synchronous>, transform_indices = @transform_1, window_bounds = array<i64: 100, 8>}, {pipeline_mode = #tpu.pipeline_mode<synchronous>, transform_indices = @transform_2, window_bounds = array<i64: 1, 8>}, {transform_indices = @transform_3, window_bounds = array<i64: 48, 8>}, {transform_indices = @transform_4, window_bounds = array<i64: 1, 2, 8>}]} {
    %c0 = arith.constant 0 : index
    %c0_0 = arith.constant 0 : index
    %0 = vector.load %arg1[%c0, %c0_0] : memref<48x100xf32, #tpu.memory_space<vmem>>, vector<48x100xf32>
    %c0_1 = arith.constant 0 : index
    %c0_2 = arith.constant 0 : index
    %1 = vector.load %arg2[%c0_1, %c0_2] : memref<100x8xf32, #tpu.memory_space<vmem>>, vector<100x8xf32>
    %cst = arith.constant dense<0.000000e+00> : vector<48x8xf32>
    %2 = tpu.matmul %0, %1, %cst {dimension_numbers = #tpu.dot_dimension_numbers<[1], [0], [0], [1], [0, 0, 1, 1], [], []>} : vector<48x100xf32>, vector<100x8xf32>, vector<48x8xf32> -> vector<48x8xf32>
    %c0_3 = arith.constant 0 : index
    %c0_4 = arith.constant 0 : index
    %3 = vector.load %arg3[%c0_3, %c0_4] : memref<1x8xf32, #tpu.memory_space<vmem>>, vector<1x8xf32>
    %4 = vector.broadcast %3 : vector<1x8xf32> to vector<48x8xf32>
    %5 = arith.addf %2, %4 : vector<48x8xf32>
    %c0_5 = arith.constant 0 : index
    %c0_6 = arith.constant 0 : index
    %6 = vector.load %arg4[%c0_5, %c0_6] : memref<48x8xf32, #tpu.memory_space<vmem>>, vector<48x8xf32>
    tpu.vector_store %arg4[%c0_5, %c0_6], %5 {strides = array<i32>} : memref<48x8xf32, #tpu.memory_space<vmem>>, vector<48x8xf32>,
    %cst_7 = arith.constant dense<0.000000e+00> : vector<8xf32>
    %7 = vector.multi_reduction <add>, %5, %cst_7 [0] : vector<48x8xf32> to vector<8xf32>
    %8 = vector.shape_cast %7 : vector<8xf32> to vector<1x8xf32>
    %9 = arith.mulf %5, %5 : vector<48x8xf32>
    %cst_8 = arith.constant dense<0.000000e+00> : vector<8xf32>
    %10 = vector.multi_reduction <add>, %9, %cst_8 [0] : vector<48x8xf32> to vector<8xf32>
    %11 = vector.shape_cast %10 : vector<8xf32> to vector<1x8xf32>
    %12 = tpu.concatenate %8, %11 in 0 : vector<1x8xf32>, vector<1x8xf32> -> vector<2x8xf32>
    %c0_9 = arith.constant 0 : index
    %c0_10 = arith.constant 0 : index
    %c0_11 = arith.constant 0 : index
    %13 = vector.load %arg5[%c0_9, %c0_10, %c0_11] : memref<1x2x8xf32, #tpu.memory_space<vmem>>, vector<1x2x8xf32>
    %14 = vector.shape_cast %13 : vector<1x2x8xf32> to vector<2x8xf32>
    %15 = vector.shape_cast %12 : vector<2x8xf32> to vector<1x2x8xf32>
    tpu.vector_store %arg5[%c0_9, %c0_10, %c0_11], %15 {strides = array<i32>} : memref<1x2x8xf32, #tpu.memory_space<vmem>>, vector<1x2x8xf32>,
    return
  }
  func.func @transform_0(%arg0: i32) -> (i32, i32) {
    %c0_i32 = arith.constant 0 : i32
    %c0_i32_0 = arith.constant 0 : i32
    return %arg0, %c0_i32 : i32, i32
  }
  func.func @transform_1(%arg0: i32) -> (i32, i32) {
    %c0_i32 = arith.constant 0 : i32
    %c0_i32_0 = arith.constant 0 : i32
    %c0_i32_1 = arith.constant 0 : i32
    return %c0_i32, %c0_i32_0 : i32, i32
  }
  func.func @transform_2(%arg0: i32) -> (i32, i32) {
    %c0_i32 = arith.constant 0 : i32
    %c0_i32_0 = arith.constant 0 : i32
    %c0_i32_1 = arith.constant 0 : i32
    return %c0_i32, %c0_i32_0 : i32, i32
  }
  func.func @transform_3(%arg0: i32) -> (i32, i32) {
    %c0_i32 = arith.constant 0 : i32
    %c0_i32_0 = arith.constant 0 : i32
    return %arg0, %c0_i32 : i32, i32
  }
  func.func @transform_4(%arg0: i32) -> (i32, i32, i32) {
    %c0_i32 = arith.constant 0 : i32
    %c0_i32_0 = arith.constant 0 : i32
    %c0_i32_1 = arith.constant 0 : i32
    return %arg0, %c0_i32, %c0_i32_0 : i32, i32, i32
  }
}

module attributes {stable_mosaic.version = 11 : i64} {
  func.func @_bn_act_kernel(%arg0: i32, %arg1: memref<144x8xf32, #tpu.memory_space<vmem>>, %arg2: memref<2x8xf32, #tpu.memory_space<vmem>>, %arg3: memref<144x8xf32, #tpu.memory_space<vmem>>) attributes {dimension_semantics = [#tpu.dimension_semantics<parallel>], iteration_bounds = array<i64: 1>, scalar_prefetch = 0 : i64, scratch_operands = 0 : i64, tpu.core_type = #tpu.core_type<tc>, window_params = [{transform_indices = @transform_0, window_bounds = array<i64: 144, 8>}, {pipeline_mode = #tpu.pipeline_mode<synchronous>, transform_indices = @transform_1, window_bounds = array<i64: 2, 8>}, {transform_indices = @transform_2, window_bounds = array<i64: 144, 8>}]} {
    %c0 = arith.constant 0 : index
    %c0_0 = arith.constant 0 : index
    %0 = vector.load %arg1[%c0, %c0_0] : memref<144x8xf32, #tpu.memory_space<vmem>>, vector<144x8xf32>
    %c0_1 = arith.constant 0 : index
    %c0_2 = arith.constant 0 : index
    %1 = vector.load %arg2[%c0_1, %c0_2] : memref<2x8xf32, #tpu.memory_space<vmem>>, vector<1x8xf32>
    %2 = vector.broadcast %1 : vector<1x8xf32> to vector<144x8xf32>
    %3 = arith.mulf %0, %2 : vector<144x8xf32>
    %c1 = arith.constant 1 : index
    %c0_3 = arith.constant 0 : index
    %4 = vector.load %arg2[%c1, %c0_3] : memref<2x8xf32, #tpu.memory_space<vmem>>, vector<1x8xf32>
    %5 = vector.broadcast %4 : vector<1x8xf32> to vector<144x8xf32>
    %6 = arith.addf %3, %5 : vector<144x8xf32>
    %cst = arith.constant 0.000000e+00 : f32
    %7 = vector.broadcast %cst : f32 to vector<144x8xf32>
    %8 = arith.cmpf ogt, %6, %7 : vector<144x8xf32>
    %cst_4 = arith.constant 2.000000e-01 : f32
    %9 = vector.broadcast %cst_4 : f32 to vector<144x8xf32>
    %10 = arith.mulf %9, %6 : vector<144x8xf32>
    %11 = arith.select %8, %6, %10 : vector<144x8xi1>, vector<144x8xf32>
    %c0_5 = arith.constant 0 : index
    %c0_6 = arith.constant 0 : index
    %12 = vector.load %arg3[%c0_5, %c0_6] : memref<144x8xf32, #tpu.memory_space<vmem>>, vector<144x8xf32>
    tpu.vector_store %arg3[%c0_5, %c0_6], %11 {strides = array<i32>} : memref<144x8xf32, #tpu.memory_space<vmem>>, vector<144x8xf32>,
    return
  }
  func.func @transform_0(%arg0: i32) -> (i32, i32) {
    %c0_i32 = arith.constant 0 : i32
    %c0_i32_0 = arith.constant 0 : i32
    return %arg0, %c0_i32 : i32, i32
  }
  func.func @transform_1(%arg0: i32) -> (i32, i32) {
    %c0_i32 = arith.constant 0 : i32
    %c0_i32_0 = arith.constant 0 : i32
    %c0_i32_1 = arith.constant 0 : i32
    return %c0_i32, %c0_i32_0 : i32, i32
  }
  func.func @transform_2(%arg0: i32) -> (i32, i32) {
    %c0_i32 = arith.constant 0 : i32
    %c0_i32_0 = arith.constant 0 : i32
    return %arg0, %c0_i32 : i32, i32
  }
}

</mosaic_0001>

<llo_original>
// kernel: basic_conv2d.2
$region0: #{basic_conv2d.2}
  #allocation0 [shape = 'u32[]', space=smem, size = 0x4, offset = 0x4, fixed_abs, tag = 'smem constant byte address 0x4 - core index']
  #allocation1 [shape = 'u32[144,128]{1,0:T(1,128)}', space=vmem, size = 0x12000, scoped, tag = 'internal scratch']
  %s0 = inlined_call_operand.vmem [shape: f32[144,100], index: 0, kind: input, shape index: {}]
  %s1 = inlined_call_operand.vmem [shape: f32[100,8], index: 1, kind: input, shape index: {}]
  %s2 = inlined_call_operand.vmem [shape: f32[1,8], index: 2, kind: input, shape index: {}]
  %s3 = inlined_call_operand.vmem [shape: f32[144,8], index: 3, kind: output, shape index: {0}]
  %s4 = inlined_call_operand.vmem [shape: f32[3,2,8], index: 4, kind: output, shape index: {1}]
  %5 = xla_tuple %s3, %s4
  %s6 = sld [smem:[#allocation0]]
  $region53: #{basic_conv2d.2} parent=0
    _
  %s8 = ssub.s32 1, %s6
  %s9 = scalar_select 0, %s8, %s6
  loop: start=0, step=1, limit=5
  $region2: #{basic_conv2d.2} parent=0 // loop_pre_header
    _
  $region3: #{basic_conv2d.2} parent=0 // loop_header
    %s11 = sphi 0, %s15
    %p12 = scmp.ge.s32.totalorder %s11, 5
    %s21 = sphi 0, %s23
    %s24 = sphi 0, %s21
    %s25 = sphi 0, %s24
    %s41 = sphi 0, %s25
    %s45 = sphi 0, %s45
    %s47 = sphi 0, %s45
    %s48 = sphi 0, %s47
    %s62 = sphi 0, %s48
    %s66 = sphi 0, %s66
    %s68 = sphi 0, %s66
    %s69 = sphi 0, %s68
    %s83 = sphi 0, %s69
    %s89 = sphi 0, %s91
    %s92 = sphi 0, %s89
    %s93 = sphi 0, %s92
    %s109 = sphi 0, %s93
    %s115 = sphi 0, %s117
    %s118 = sphi 0, %s115
    %s119 = sphi 0, %s118
    %s135 = sphi 0, %s119
  $region4: #{basic_conv2d.2} parent=0 // loop_header_branch
    %14 = sbr.rel (%p12) target = $region8
  $region5: #{basic_conv2d.2} parent=0 // loop_body
    %s16 = ssub.s32 %s11, 1
    %s17 = ssub.s32 %s11, 2
    %s18 = sadd.s32 %s11, 1
    %s19 = ssub.s32 %s11, %s18
    %p20 = scmp.eq.s32.totalorder %s19, 0
    %s22 = sadd.s32 %s21, 1
    %s23 = scalar_select %p20, %s21, %s22
    %p26 = pneg %p20
    %p27 = scmp.eq.s32.totalorder %s11, 2
    %p28 = por %p26, %p27
    %p29 = scmp.ne.s32.totalorder %s21, %s24
    %p30 = scmp.eq.s32.totalorder %s11, 0
    %p31 = por %p29, %p30
    %p32 = scmp.ne.s32.totalorder %s21, %s24
    %p33 = scmp.eq.s32.totalorder %s16, 2
    %p34 = por %p32, %p33
    %p35 = scmp.ne.s32.totalorder %s24, %s25
    %p36 = scmp.eq.s32.totalorder %s16, 0
    %p37 = por %p35, %p36
    %p38 = scmp.ne.s32.totalorder %s24, %s25
    %p39 = scmp.eq.s32.totalorder %s17, 2
    %p40 = por %p38, %p39
    %p42 = scmp.ne.s32.totalorder %s25, %s41
    %p43 = scmp.eq.s32.totalorder %s17, 0
    %p44 = por %p42, %p43
    %s46 = sadd.s32 %s45, 1
    %p49 = scmp.eq.s32.totalorder %s11, 2
    %p50 = scmp.ne.s32.totalorder %s45, %s47
    %p51 = scmp.eq.s32.totalorder %s11, 0
    %p52 = por %p50, %p51
    %p53 = scmp.ne.s32.totalorder %s45, %s47
    %p54 = scmp.eq.s32.totalorder %s16, 2
    %p55 = por %p53, %p54
    %p56 = scmp.ne.s32.totalorder %s47, %s48
    %p57 = scmp.eq.s32.totalorder %s16, 0
    %p58 = por %p56, %p57
    %p59 = scmp.ne.s32.totalorder %s47, %s48
    %p60 = scmp.eq.s32.totalorder %s17, 2
    %p61 = por %p59, %p60
    %p63 = scmp.ne.s32.totalorder %s48, %s62
    %p64 = scmp.eq.s32.totalorder %s17, 0
    %p65 = por %p63, %p64
    %s67 = sadd.s32 %s66, 1
    %p70 = scmp.eq.s32.totalorder %s11, 2
    %p71 = scmp.ne.s32.totalorder %s66, %s68
    %p72 = scmp.eq.s32.totalorder %s11, 0
    %p73 = por %p71, %p72
    %p74 = scmp.ne.s32.totalorder %s66, %s68
    %p75 = scmp.eq.s32.totalorder %s16, 2
    %p76 = por %p74, %p75
    %p77 = scmp.ne.s32.totalorder %s68, %s69
    %p78 = scmp.eq.s32.totalorder %s16, 0
    %p79 = por %p77, %p78
    %p80 = scmp.ne.s32.totalorder %s68, %s69
    %p81 = scmp.eq.s32.totalorder %s17, 2
    %p82 = por %p80, %p81
    %p84 = scmp.ne.s32.totalorder %s69, %s83
    %p85 = scmp.eq.s32.totalorder %s17, 0
    %p86 = por %p84, %p85
    %s87 = ssub.s32 %s11, %s18
    %p88 = scmp.eq.s32.totalorder %s87, 0
    %s90 = sadd.s32 %s89, 1
    %s91 = scalar_select %p88, %s89, %s90
    %p94 = pneg %p88
    %p95 = scmp.eq.s32.totalorder %s11, 2
    %p96 = por %p94, %p95
    %p97 = scmp.ne.s32.totalorder %s89, %s92
    %p98 = scmp.eq.s32.totalorder %s11, 0
    %p99 = por %p97, %p98
    %p100 = scmp.ne.s32.totalorder %s89, %s92
    %p101 = scmp.eq.s32.totalorder %s16, 2
    %p102 = por %p100, %p101
    %p103 = scmp.ne.s32.totalorder %s92, %s93
    %p104 = scmp.eq.s32.totalorder %s16, 0
    %p105 = por %p103, %p104
    %p106 = scmp.ne.s32.totalorder %s92, %s93
    %p107 = scmp.eq.s32.totalorder %s17, 2
    %p108 = por %p106, %p107
    %p110 = scmp.ne.s32.totalorder %s93, %s109
    %p111 = scmp.eq.s32.totalorder %s17, 0
    %p112 = por %p110, %p111
    %s113 = ssub.s32 %s11, %s18
    %p114 = scmp.eq.s32.totalorder %s113, 0
    %s116 = sadd.s32 %s115, 1
    %s117 = scalar_select %p114, %s115, %s116
    %p120 = pneg %p114
    %p121 = scmp.eq.s32.totalorder %s11, 2
    %p122 = por %p120, %p121
    %p123 = scmp.ne.s32.totalorder %s115, %s118
    %p124 = scmp.eq.s32.totalorder %s11, 0
    %p125 = por %p123, %p124
    %p126 = scmp.ne.s32.totalorder %s115, %s118
    %p127 = scmp.eq.s32.totalorder %s16, 2
    %p128 = por %p126, %p127
    %p129 = scmp.ne.s32.totalorder %s118, %s119
    %p130 = scmp.eq.s32.totalorder %s16, 0
    %p131 = por %p129, %p130
    %p132 = scmp.ne.s32.totalorder %s118, %s119
    %p133 = scmp.eq.s32.totalorder %s17, 2
    %p134 = por %p132, %p133
    %p136 = scmp.ne.s32.totalorder %s119, %s135
    %p137 = scmp.eq.s32.totalorder %s17, 0
    %p138 = por %p136, %p137
    %p139 = scmp.le.s32.totalorder 1, %s11
    %p140 = scmp.lt.s32.totalorder %s11, 4
    %p141 = pnand %p139, %p140
    %p142 = pneg %p141
    // Predicated region
    $region9: #{basic_conv2d.2} parent=5 // pred_check
      _
    $region10: #{basic_conv2d.2} parent=5 // pred_check_branch
      %144 = sbr.rel (%p141) target = $region12
    $region11: #{basic_conv2d.2} parent=5 // pred_region
      %s145 = ssub.s32 %s11, 1
      // Predicated region
      $region13: #{basic_conv2d.2} parent=11 // pred_check
        %p146 = pneg %p58
      $region14: #{basic_conv2d.2} parent=11 // pred_check_branch
        %148 = sbr.rel (%p146) target = $region16
      $region15: #{basic_conv2d.2} parent=11 // pred_region
        _
      $region16: #{basic_conv2d.2} parent=11 // pred_fallthru
        _
      // Predicated region
      $region17: #{basic_conv2d.2} parent=11 // pred_check
        %p149 = pneg %p79
      $region18: #{basic_conv2d.2} parent=11 // pred_check_branch
        %151 = sbr.rel (%p149) target = $region20
      $region19: #{basic_conv2d.2} parent=11 // pred_region
        _
      $region20: #{basic_conv2d.2} parent=11 // pred_fallthru
        _
    $region12: #{basic_conv2d.2} parent=5 // pred_fallthru
      _
    %p152 = scmp.lt.s32.totalorder %s11, 3
    // Predicated region
    $region21: #{basic_conv2d.2} parent=5 // pred_check
      %p153 = pneg %p152
    $region22: #{basic_conv2d.2} parent=5 // pred_check_branch
      %155 = sbr.rel (%p153) target = $region24
    $region23: #{basic_conv2d.2} parent=5 // pred_region
      // Predicated region
      $region25: #{basic_conv2d.2} parent=23 // pred_check
        %p156 = pneg %p31
      $region26: #{basic_conv2d.2} parent=23 // pred_check_branch
        %158 = sbr.rel (%p156) target = $region28
      $region27: #{basic_conv2d.2} parent=23 // pred_region
        %s159 = smul.u32 6, %s11
        %p160 = scmp.lt.s32.totalorder %s159, 17
        %s161 = scalar_select %p160, %s159, 17
        %s162 = smul.addr %s161, 8
        %s163 = scalar_lea.vmem %s0, %s162
        %s164 = smul.u32 6, %s11
      $region28: #{basic_conv2d.2} parent=23 // pred_fallthru
        _
    $region24: #{basic_conv2d.2} parent=5 // pred_fallthru
      _
    %p165 = scmp.le.s32.totalorder 1, %s11
    %p166 = scmp.lt.s32.totalorder %s11, 4
    %p167 = pnand %p165, %p166
    %p168 = pneg %p167
    // Predicated region
    $region29: #{basic_conv2d.2} parent=5 // pred_check
      _
    $region30: #{basic_conv2d.2} parent=5 // pred_check_branch
      %170 = sbr.rel (%p167) target = $region32
    $region31: #{basic_conv2d.2} parent=5 // pred_region
      %s171 = ssub.s32 %s11, 1
      %s172 = smul.u32 6, %s16
      %p173 = scmp.lt.s32.totalorder %s172, 17
      %s174 = scalar_select %p173, %s172, 17
      %s175 = smul.addr %s174, 8
      %s176 = scalar_lea.vmem %s0, %s175
      %p177 = pneg %p37
      %p178 = pneg %p34
      %p179 = pneg %p58
      %p180 = pneg %p55
      %p181 = pneg %p79
      %p182 = pneg %p76
      %p183 = pneg %p105
      %p184 = pneg %p102
      %s185 = smul.u32 6, %s16
      %p186 = scmp.lt.s32.totalorder %s185, 17
      %s187 = scalar_select %p186, %s185, 17
      %s188 = smul.addr %s187, 8
      %s189 = scalar_lea.vmem %s3, %s188
      %p190 = pneg %p131
      %p191 = pneg %p128
      %p192 = scmp.lt.s32.totalorder %s16, 2
      %s193 = scalar_select %p192, %s16, 2
      %s194 = smul.addr %s193, 2
      %s195 = scalar_lea.vmem %s4, %s194
      %s196 = smul.u32 6, %s16
      %p197 = scmp.lt.s32.totalorder %s196, 17
      %s198 = scalar_select %p197, %s196, 17
      %s199 = smul.addr %s198, 8
      %s200 = scalar_lea.vmem %s0, %s199
      %s201 = smul.u32 6, %s16
      %s202 = smul.u32 6, %s16
      %p203 = scmp.lt.s32.totalorder %s202, 17
      %s204 = scalar_select %p203, %s202, 17
      %s205 = smul.addr %s204, 8
      %s206 = scalar_lea.vmem %s3, %s205
      %s207 = smul.u32 6, %s16
      %p208 = scmp.lt.s32.totalorder %s16, 2
      %s209 = scalar_select %p208, %s16, 2
      %s210 = smul.addr %s209, 2
      %s211 = scalar_lea.vmem %s4, %s210
      %v212 = vld [vmem:[%s200] sm:$0xff]
      %v213 = vld [vmem:[%s200 + $0x8] sm:$0xff]
      %v214 = vld [vmem:[%s200 + $0x10] sm:$0xff]
      %v215 = vld [vmem:[%s200 + $0x18] sm:$0xff]
      %v216 = vld [vmem:[%s200 + $0x20] sm:$0xff]
      %v217 = vld [vmem:[%s200 + $0x28] sm:$0xff]
      %v218 = vld [vmem:[%s1] sm:$0xff]
      %v219 = vld [vmem:[%s1 + $0x8] sm:$0xff]
      %v220 = vld [vmem:[%s1 + $0x10] sm:$0xff]
      %v221 = vld [vmem:[%s1 + $0x18] sm:$0xff]
      %v222 = vld [vmem:[%s1 + $0x20] sm:$0xff]
      %v223 = vld [vmem:[%s1 + $0x28] sm:$0xff]
      %v224 = vld [vmem:[%s1 + $0x30] sm:$0xff]
      %v225 = vld [vmem:[%s1 + $0x38] sm:$0xff]
      %v226 = vld [vmem:[%s1 + $0x40] sm:$0xff]
      %v227 = vld [vmem:[%s1 + $0x48] sm:$0xff]
      %v228 = vld [vmem:[%s1 + $0x50] sm:$0xff]
      %v229 = vld [vmem:[%s1 + $0x58] sm:$0xff]
      %v230 = vld [vmem:[%s1 + $0x60] sm:$0xf]
      %v231 = vld [vmem:[%s2] sm:$0x1]
      %v233 = vlaneseq
      %v234 = vshrl.u32 %v233, 7
      %v235 = vsub.s32 0, %v234
      %v236 = vrot.slane %v231, %v235
      %vm238 = vcmask 818176
      %v240 = vsel %vm238, %v212, 0
      %v243 = vsel %vm238, %v213, 0
      %v246 = vsel %vm238, %v214, 0
      %v249 = vsel %vm238, %v215, 0
      %v252 = vsel %vm238, %v216, 0
      %v255 = vsel %vm238, %v217, 0
      %vm257 = vcmask 1043456
      %v259 = vsel %vm257, %v230, 0
      %261 = vmatprep.subr.mxu0 0.0
      %262 = vmatpush1.msra.mxu0 %v218
      %263 = vmatprep.subr.mxu0 0.0
      %264 = vmatpush1.msra.mxu0 %v219
      %265 = vmatprep.subr.mxu0 0.0
      %266 = vmatpush1.msra.mxu0 %v220
      %267 = vmatprep.subr.mxu0 0.0
      %268 = vmatpush1.msra.mxu0 %v221
      %269 = vmatprep.subr.mxu0 0.0
      %270 = vmatpush1.msra.mxu0 %v222
      %271 = vmatprep.subr.mxu0 0.0
      %272 = vmatpush1.msra.mxu0 %v223
      %273 = vmatprep.subr.mxu0 0.0
      %274 = vmatpush1.msra.mxu0 %v224
      %275 = vmatprep.subr.mxu0 0.0
      %276 = vmatpush1.msra.mxu0 %v225
      %277 = vmatprep.subr.mxu0 0.0
      %278 = vmatpush1.msra.mxu0 %v226
      %279 = vmatprep.subr.mxu0 0.0
      %280 = vmatpush1.msra.mxu0 %v227
      %281 = vmatprep.subr.mxu0 0.0
      %282 = vmatpush1.msra.mxu0 %v228
      %283 = vmatprep.subr.mxu0 0.0
      %284 = vmatpush1.msra.mxu0 %v229
      %285 = vmatprep.subr.mxu0 0.0
      %286 = vmatpush1.msra.mxu0 %v259
      %287 = vmatprep.subr.mxu0 0.0
      %288 = vmatpush1.msra.mxu0 0.0
      %289 = vmatprep.subr.mxu0 0.0
      %290 = vmatpush1.msra.mxu0 0.0
      %291 = vmatprep.subr.mxu0 0.0
      %292 = vmatpush1.msra.mxu0 0.0
      %293 = vmatprep.subr.mxu0 0.0
      %294 = vmatpush1.msra.mxu0 0.0
      %295 = vmatprep.subr.mxu0 0.0
      %296 = vmatpush1.msra.mxu0 0.0
      %297 = vmatprep.subr.mxu0 0.0
      %298 = vmatpush1.msra.mxu0 0.0
      %299 = vmatprep.subr.mxu0 0.0
      %300 = vmatpush1.msra.mxu0 0.0
      %301 = vmatprep.subr.mxu0 0.0
      %302 = vmatpush1.msra.mxu0 0.0
      %303 = vmatprep.subr.mxu0 0.0
      %304 = vmatpush1.msra.mxu0 0.0
      %305 = vmatprep.subr.mxu0 0.0
      %306 = vmatpush1.msra.mxu0 0.0
      %307 = vmatprep.subr.mxu0 0.0
      %308 = vmatpush1.msra.mxu0 0.0
      %309 = vmatprep.subr.mxu0 0.0
      %310 = vmatpush1.msra.mxu0 0.0
      %311 = vmatprep.subr.mxu0 0.0
      %312 = vmatpush1.msra.mxu0 0.0
      %313 = vmatprep.subr.mxu0 0.0
      %314 = vmatpush1.msra.mxu0 0.0
      %315 = vmatprep.subr.mxu0 0.0
      %316 = vmatpush1.msra.mxu0 0.0
      %317 = vmatprep.subr.mxu0 0.0
      %318 = vmatpush1.msra.mxu0 0.0
      %319 = vmatprep.subr.mxu0 0.0
      %320 = vmatpush1.msra.mxu0 0.0
      %321 = vmatprep.subr.mxu0 0.0
      %322 = vmatpush1.msra.mxu0 0.0
      %323 = vmatprep.subr.mxu0 0.0
      %324 = vmatpush1.msra.mxu0 0.0
      %325 = vmatprep.mubr.f32.mxu0 0.0
      %326 = vmatmul.mubr.f32.gmra.mrb[0].mxu0 %v240
      %v327 = vpop.f32.mrb[0].mxu0
      %v328 = vadd.f32 %v236, %v327
      %v329 = vpop.f32.mrb[0].mxu0
      %330 = vmatprep.mubr.f32.mxu0 0.0
      %331 = vmatmul.mubr.f32.gmra.mrb[0].mxu0 %v243
      %v332 = vpop.f32.mrb[0].mxu0
      %v333 = vadd.f32 %v236, %v332
      %v334 = vpop.f32.mrb[0].mxu0
      %335 = vmatprep.mubr.f32.mxu0 0.0
      %336 = vmatmul.mubr.f32.gmra.mrb[0].mxu0 %v246
      %v337 = vpop.f32.mrb[0].mxu0
      %v338 = vadd.f32 %v236, %v337
      %v339 = vpop.f32.mrb[0].mxu0
      %340 = vmatprep.mubr.f32.mxu0 0.0
      %341 = vmatmul.mubr.f32.gmra.mrb[0].mxu0 %v249
      %v342 = vpop.f32.mrb[0].mxu0
      %v343 = vadd.f32 %v236, %v342
      %v344 = vpop.f32.mrb[0].mxu0
      %345 = vmatprep.mubr.f32.mxu0 0.0
      %346 = vmatmul.mubr.f32.gmra.mrb[0].mxu0 %v252
      %v347 = vpop.f32.mrb[0].mxu0
      %v348 = vadd.f32 %v236, %v347
      %v349 = vpop.f32.mrb[0].mxu0
      %350 = vmatprep.mubr.f32.mxu0 0.0
      %351 = vmatmul.mubr.f32.gmra.mrb[0].mxu0 %v255
      %v352 = vpop.f32.mrb[0].mxu0
      %v353 = vadd.f32 %v236, %v352
      %v354 = vpop.f32.mrb[0].mxu0
      %355 = vdwg.mxu0
      %vm356 = vcmask 64512
      %357 = vst.msk [vmem:[%s206] sm:$0xff] %vm356, %v328
      %358 = vst.msk [vmem:[%s206 + $0x8] sm:$0xff] %vm356, %v333
      %359 = vst.msk [vmem:[%s206 + $0x10] sm:$0xff] %vm356, %v338
      %360 = vst.msk [vmem:[%s206 + $0x18] sm:$0xff] %vm356, %v343
      %361 = vst.msk [vmem:[%s206 + $0x20] sm:$0xff] %vm356, %v348
      %362 = vst.msk [vmem:[%s206 + $0x28] sm:$0xff] %vm356, %v353
      %v363 = vsel %vm356, %v328, 0.0
      %v364 = vsel %vm356, %v333, 0.0
      %v365 = vadd.f32 %v363, %v364
      %v366 = vsel %vm356, %v338, 0.0
      %v367 = vadd.f32 %v365, %v366
      %v368 = vsel %vm356, %v343, 0.0
      %v369 = vadd.f32 %v367, %v368
      %v370 = vsel %vm356, %v348, 0.0
      %v371 = vadd.f32 %v369, %v370
      %v372 = vsel %vm356, %v353, 0.0
      %v373 = vadd.f32 %v371, %v372
      %v374 = vrot.slane %v373, 4
      %v375 = vadd.f32 %v373, %v374
      %v376 = vrot.slane %v375, 2
      %v377 = vadd.f32 %v375, %v376
      %v378 = vrot.slane %v377, 1
      %v379 = vadd.f32 %v377, %v378
      %v380 = vmul.f32 %v328, %v328
      %v381 = vmul.f32 %v333, %v333
      %v382 = vmul.f32 %v338, %v338
      %v383 = vmul.f32 %v343, %v343
      %v384 = vmul.f32 %v348, %v348
      %v385 = vmul.f32 %v353, %v353
      %v386 = vsel %vm356, %v380, 0.0
      %v387 = vsel %vm356, %v381, 0.0
      %v388 = vadd.f32 %v386, %v387
      %v389 = vsel %vm356, %v382, 0.0
      %v390 = vadd.f32 %v388, %v389
      %v391 = vsel %vm356, %v383, 0.0
      %v392 = vadd.f32 %v390, %v391
      %v393 = vsel %vm356, %v384, 0.0
      %v394 = vadd.f32 %v392, %v393
      %v395 = vsel %vm356, %v385, 0.0
      %v396 = vadd.f32 %v394, %v395
      %v397 = vrot.slane %v396, 4
      %v398 = vadd.f32 %v396, %v397
      %v399 = vrot.slane %v398, 2
      %v400 = vadd.f32 %v398, %v399
      %v401 = vrot.slane %v400, 1
      %v402 = vadd.f32 %v400, %v401
      %vm403 = vcmask 1040384
      %v404 = vsel %vm403, %v379, %v402
      %vm405 = vcmask 58368
      %406 = vst.msk [vmem:[%s211] sm:$0x3] %vm405, %v404
      %s407 = smul.u32 6, %s16
      %p408 = scmp.lt.s32.totalorder %s407, 17
      %s409 = scalar_select %p408, %s407, 17
      %s410 = smul.addr %s409, 8
      %s411 = scalar_lea.vmem %s3, %s410
      %p412 = scmp.lt.s32.totalorder %s16, 2
      %s413 = scalar_select %p412, %s16, 2
      %s414 = smul.addr %s413, 2
      %s415 = scalar_lea.vmem %s4, %s414
      // Predicated region
      $region33: #{basic_conv2d.2} parent=31 // pred_check
        %p416 = pneg %p102
      $region34: #{basic_conv2d.2} parent=31 // pred_check_branch
        %418 = sbr.rel (%p416) target = $region36
      $region35: #{basic_conv2d.2} parent=31 // pred_region
        %s419 = smul.u32 6, %s16
      $region36: #{basic_conv2d.2} parent=31 // pred_fallthru
        _
      // Predicated region
      $region37: #{basic_conv2d.2} parent=31 // pred_check
        %p420 = pneg %p128
      $region38: #{basic_conv2d.2} parent=31 // pred_check_branch
        %422 = sbr.rel (%p420) target = $region40
      $region39: #{basic_conv2d.2} parent=31 // pred_region
        _
      $region40: #{basic_conv2d.2} parent=31 // pred_fallthru
        _
    $region32: #{basic_conv2d.2} parent=5 // pred_fallthru
      _
    %p423 = scmp.le.s32.totalorder 2, %s11
    // Predicated region
    $region41: #{basic_conv2d.2} parent=5 // pred_check
      %p424 = pneg %p423
    $region42: #{basic_conv2d.2} parent=5 // pred_check_branch
      %426 = sbr.rel (%p424) target = $region44
    $region43: #{basic_conv2d.2} parent=5 // pred_region
      %s427 = ssub.s32 %s11, 2
      // Predicated region
      $region45: #{basic_conv2d.2} parent=43 // pred_check
        %p428 = pneg %p108
      $region46: #{basic_conv2d.2} parent=43 // pred_check_branch
        %430 = sbr.rel (%p428) target = $region48
      $region47: #{basic_conv2d.2} parent=43 // pred_region
        %s431 = smul.u32 6, %s17
        %p432 = scmp.lt.s32.totalorder %s431, 17
        %s433 = scalar_select %p432, %s431, 17
        %s434 = smul.addr %s433, 8
        %s435 = scalar_lea.vmem %s3, %s434
      $region48: #{basic_conv2d.2} parent=43 // pred_fallthru
        _
      // Predicated region
      $region49: #{basic_conv2d.2} parent=43 // pred_check
        %p436 = pneg %p134
      $region50: #{basic_conv2d.2} parent=43 // pred_check_branch
        %438 = sbr.rel (%p436) target = $region52
      $region51: #{basic_conv2d.2} parent=43 // pred_region
        %p439 = scmp.lt.s32.totalorder %s17, 2
        %s440 = scalar_select %p439, %s17, 2
        %s441 = smul.addr %s440, 2
        %s442 = scalar_lea.vmem %s4, %s441
      $region52: #{basic_conv2d.2} parent=43 // pred_fallthru
        _
    $region44: #{basic_conv2d.2} parent=5 // pred_fallthru
      _
  $region6: #{basic_conv2d.2} parent=0 // loop_footer
    %s15 = sadd.s32 1, %s11
  $region7: #{basic_conv2d.2} parent=0 // loop_footer_branch
    %10 = sbr.rel target = $region3
  $region8: #{basic_conv2d.2} parent=0 // loop_exit
    _

// kernel: basic_conv2d.3
$region0: #{basic_conv2d.3}
  #allocation0 [shape = 'u32[]', space=smem, size = 0x4, offset = 0x4, fixed_abs, tag = 'smem constant byte address 0x4 - core index']
  #allocation1 [shape = 'u32[144,128]{1,0:T(1,128)}', space=vmem, size = 0x12000, scoped, tag = 'internal scratch']
  %s0 = inlined_call_operand.vmem [shape: f32[144,8], index: 0, kind: input, shape index: {}]
  %s1 = inlined_call_operand.vmem [shape: f32[2,8], index: 1, kind: input, shape index: {}]
  %s2 = inlined_call_operand.vmem [shape: f32[144,8], index: 2, kind: output, shape index: {}]
  %s3 = sld [smem:[#allocation0]]
  $region18: #{basic_conv2d.3} parent=0
    _
  %s5 = ssub.s32 1, %s3
  %s6 = scalar_select 0, %s5, %s3
  // Predicated region
  $region2: #{basic_conv2d.3} parent=0 // pred_check
    _
  $region3: #{basic_conv2d.3} parent=0 // pred_check_branch
    %8 = sbr.rel (0) target = $region5
  $region4: #{basic_conv2d.3} parent=0 // pred_region
    _
  $region5: #{basic_conv2d.3} parent=0 // pred_fallthru
    _
  // Predicated region
  $region6: #{basic_conv2d.3} parent=0 // pred_check
    _
  $region7: #{basic_conv2d.3} parent=0 // pred_check_branch
    %10 = sbr.rel (0) target = $region9
  $region8: #{basic_conv2d.3} parent=0 // pred_region
    _
  $region9: #{basic_conv2d.3} parent=0 // pred_fallthru
    _
  %v11 = vld [vmem:[%s0] sm:$0xff]
  %v12 = vld [vmem:[%s0 + $0x8] sm:$0xff]
  %v13 = vld [vmem:[%s0 + $0x10] sm:$0xff]
  %v14 = vld [vmem:[%s0 + $0x18] sm:$0xff]
  %v15 = vld [vmem:[%s0 + $0x20] sm:$0xff]
  %v16 = vld [vmem:[%s0 + $0x28] sm:$0xff]
  %v17 = vld [vmem:[%s0 + $0x30] sm:$0xff]
  %v18 = vld [vmem:[%s0 + $0x38] sm:$0xff]
  %v19 = vld [vmem:[%s0 + $0x40] sm:$0xff]
  %v20 = vld [vmem:[%s0 + $0x48] sm:$0xff]
  %v21 = vld [vmem:[%s0 + $0x50] sm:$0xff]
  %v22 = vld [vmem:[%s0 + $0x58] sm:$0xff]
  %v23 = vld [vmem:[%s0 + $0x60] sm:$0xff]
  %v24 = vld [vmem:[%s0 + $0x68] sm:$0xff]
  %v25 = vld [vmem:[%s0 + $0x70] sm:$0xff]
  %v26 = vld [vmem:[%s0 + $0x78] sm:$0xff]
  %v27 = vld [vmem:[%s0 + $0x80] sm:$0xff]
  %v28 = vld [vmem:[%s0 + $0x88] sm:$0xff]
  %v29 = vld [vmem:[%s1] sm:$0x1]
  %v30 = vlaneseq
  %v31 = vshrl.u32 %v30, 7
  %v32 = vsub.s32 0, %v31
  %v33 = vrot.slane %v29, %v32
  %v34 = vmul.f32 %v11, %v33
  %v35 = vmul.f32 %v12, %v33
  %v36 = vmul.f32 %v13, %v33
  %v37 = vmul.f32 %v14, %v33
  %v38 = vmul.f32 %v15, %v33
  %v39 = vmul.f32 %v16, %v33
  %v40 = vmul.f32 %v17, %v33
  %v41 = vmul.f32 %v18, %v33
  %v42 = vmul.f32 %v19, %v33
  %v43 = vmul.f32 %v20, %v33
  %v44 = vmul.f32 %v21, %v33
  %v45 = vmul.f32 %v22, %v33
  %v46 = vmul.f32 %v23, %v33
  %v47 = vmul.f32 %v24, %v33
  %v48 = vmul.f32 %v25, %v33
  %v49 = vmul.f32 %v26, %v33
  %v50 = vmul.f32 %v27, %v33
  %v51 = vmul.f32 %v28, %v33
  %v52 = vld [vmem:[%s1 + $0x1] sm:$0x1]
  %v53 = vlaneseq
  %v54 = vshrl.u32 %v53, 7
  %v55 = vsub.s32 0, %v54
  %v56 = vrot.slane %v52, %v55
  %v57 = vadd.f32 %v34, %v56
  %v58 = vadd.f32 %v35, %v56
  %v59 = vadd.f32 %v36, %v56
  %v60 = vadd.f32 %v37, %v56
  %v61 = vadd.f32 %v38, %v56
  %v62 = vadd.f32 %v39, %v56
  %v63 = vadd.f32 %v40, %v56
  %v64 = vadd.f32 %v41, %v56
  %v65 = vadd.f32 %v42, %v56
  %v66 = vadd.f32 %v43, %v56
  %v67 = vadd.f32 %v44, %v56
  %v68 = vadd.f32 %v45, %v56
  %v69 = vadd.f32 %v46, %v56
  %v70 = vadd.f32 %v47, %v56
  %v71 = vadd.f32 %v48, %v56
  %v72 = vadd.f32 %v49, %v56
  %v73 = vadd.f32 %v50, %v56
  %v74 = vadd.f32 %v51, %v56
  %vm75 = vcmp.gt.f32.partialorder %v57, 0.0
  %vm76 = vcmp.gt.f32.partialorder %v58, 0.0
  %vm77 = vcmp.gt.f32.partialorder %v59, 0.0
  %vm78 = vcmp.gt.f32.partialorder %v60, 0.0
  %vm79 = vcmp.gt.f32.partialorder %v61, 0.0
  %vm80 = vcmp.gt.f32.partialorder %v62, 0.0
  %vm81 = vcmp.gt.f32.partialorder %v63, 0.0
  %vm82 = vcmp.gt.f32.partialorder %v64, 0.0
  %vm83 = vcmp.gt.f32.partialorder %v65, 0.0
  %vm84 = vcmp.gt.f32.partialorder %v66, 0.0
  %vm85 = vcmp.gt.f32.partialorder %v67, 0.0
  %vm86 = vcmp.gt.f32.partialorder %v68, 0.0
  %vm87 = vcmp.gt.f32.partialorder %v69, 0.0
  %vm88 = vcmp.gt.f32.partialorder %v70, 0.0
  %vm89 = vcmp.gt.f32.partialorder %v71, 0.0
  %vm90 = vcmp.gt.f32.partialorder %v72, 0.0
  %vm91 = vcmp.gt.f32.partialorder %v73, 0.0
  %vm92 = vcmp.gt.f32.partialorder %v74, 0.0
  %v93 = vmul.f32 %v57, 0.2
  %v94 = vmul.f32 %v58, 0.2
  %v95 = vmul.f32 %v59, 0.2
  %v96 = vmul.f32 %v60, 0.2
  %v97 = vmul.f32 %v61, 0.2
  %v98 = vmul.f32 %v62, 0.2
  %v99 = vmul.f32 %v63, 0.2
  %v100 = vmul.f32 %v64, 0.2
  %v101 = vmul.f32 %v65, 0.2
  %v102 = vmul.f32 %v66, 0.2
  %v103 = vmul.f32 %v67, 0.2
  %v104 = vmul.f32 %v68, 0.2
  %v105 = vmul.f32 %v69, 0.2
  %v106 = vmul.f32 %v70, 0.2
  %v107 = vmul.f32 %v71, 0.2
  %v108 = vmul.f32 %v72, 0.2
  %v109 = vmul.f32 %v73, 0.2
  %v110 = vmul.f32 %v74, 0.2
  %v111 = vsel %vm75, %v57, %v93
  %v112 = vsel %vm76, %v58, %v94
  %v113 = vsel %vm77, %v59, %v95
  %v114 = vsel %vm78, %v60, %v96
  %v115 = vsel %vm79, %v61, %v97
  %v116 = vsel %vm80, %v62, %v98
  %v117 = vsel %vm81, %v63, %v99
  %v118 = vsel %vm82, %v64, %v100
  %v119 = vsel %vm83, %v65, %v101
  %v120 = vsel %vm84, %v66, %v102
  %v121 = vsel %vm85, %v67, %v103
  %v122 = vsel %vm86, %v68, %v104
  %v123 = vsel %vm87, %v69, %v105
  %v124 = vsel %vm88, %v70, %v106
  %v125 = vsel %vm89, %v71, %v107
  %v126 = vsel %vm90, %v72, %v108
  %v127 = vsel %vm91, %v73, %v109
  %v128 = vsel %vm92, %v74, %v110
  %vm129 = vcmask 64512
  %130 = vst.msk [vmem:[%s2] sm:$0xff] %vm129, %v111
  %131 = vst.msk [vmem:[%s2 + $0x8] sm:$0xff] %vm129, %v112
  %132 = vst.msk [vmem:[%s2 + $0x10] sm:$0xff] %vm129, %v113
  %133 = vst.msk [vmem:[%s2 + $0x18] sm:$0xff] %vm129, %v114
  %134 = vst.msk [vmem:[%s2 + $0x20] sm:$0xff] %vm129, %v115
  %135 = vst.msk [vmem:[%s2 + $0x28] sm:$0xff] %vm129, %v116
  %136 = vst.msk [vmem:[%s2 + $0x30] sm:$0xff] %vm129, %v117
  %137 = vst.msk [vmem:[%s2 + $0x38] sm:$0xff] %vm129, %v118
  %138 = vst.msk [vmem:[%s2 + $0x40] sm:$0xff] %vm129, %v119
  %139 = vst.msk [vmem:[%s2 + $0x48] sm:$0xff] %vm129, %v120
  %140 = vst.msk [vmem:[%s2 + $0x50] sm:$0xff] %vm129, %v121
  %141 = vst.msk [vmem:[%s2 + $0x58] sm:$0xff] %vm129, %v122
  %142 = vst.msk [vmem:[%s2 + $0x60] sm:$0xff] %vm129, %v123
  %143 = vst.msk [vmem:[%s2 + $0x68] sm:$0xff] %vm129, %v124
  %144 = vst.msk [vmem:[%s2 + $0x70] sm:$0xff] %vm129, %v125
  %145 = vst.msk [vmem:[%s2 + $0x78] sm:$0xff] %vm129, %v126
  %146 = vst.msk [vmem:[%s2 + $0x80] sm:$0xff] %vm129, %v127
  %147 = vst.msk [vmem:[%s2 + $0x88] sm:$0xff] %vm129, %v128
  // Predicated region
  $region10: #{basic_conv2d.3} parent=0 // pred_check
    _
  $region11: #{basic_conv2d.3} parent=0 // pred_check_branch
    %149 = sbr.rel (0) target = $region13
  $region12: #{basic_conv2d.3} parent=0 // pred_region
    _
  $region13: #{basic_conv2d.3} parent=0 // pred_fallthru
    _
  // Predicated region
  $region14: #{basic_conv2d.3} parent=0 // pred_check
    _
  $region15: #{basic_conv2d.3} parent=0 // pred_check_branch
    %151 = sbr.rel (0) target = $region17
  $region16: #{basic_conv2d.3} parent=0 // pred_region
    _
  $region17: #{basic_conv2d.3} parent=0 // pred_fallthru
    _

</llo_original>
